<compile_context>
chip_gen: v5e
topology: v5e:2x2
jax: 0.10.0
libtpu: 0.0.40
codegen_flags: <defaults>
</compile_context>

<pallas_src>
import jax
import jax.numpy as jnp
from jax.experimental import pallas as pl
from jax.experimental.pallas import tpu as pltpu

_LANES = 128


# ----------------------------- fused Pallas kernel ---------------------------

def _fused_kernel(xw_ref, wk_ref, bias_ref, planes_ref, mask_ref, fcb_ref, o_ref):
    """Fused Conv1d(valid) + bias + ReLU -> Flatten -> Linear(->n_cls).

    xw_ref:     (c_in, P2)         x laid out as [ci, n*L + j], zero-padded lanes
    wk_ref:     (K, c_out, c_in)   conv weight, tap-major
    bias_ref:   (c_out, 1)         conv bias
    planes_ref: (n_cls, c_out, P)  classifier weight planes, same column layout,
                                   ZERO at invalid columns (j >= l_out, lane pad)
    mask_ref:   (b, P)             0/1 batch-membership mask, ZERO at invalid cols
    fcb_ref:    (1, n_cls)         fc bias
    o_ref:      (b, n_cls)         logits
    """
    n_cls, c_out, P = planes_ref.shape
    K = wk_ref.shape[0]

    # Encoder: Conv1d(valid) as K shifted-slice matmuls on the MXU.
    # Tap k reads columns [k, k+P) of xw, i.e. x[n, ci, j+k] at output col n*L+j.
    acc = jnp.dot(wk_ref[0], xw_ref[:, pl.ds(0, P)],
                  preferred_element_type=jnp.float32)
    for k in range(1, K):                                   # static unroll (K=3)
        acc += jnp.dot(wk_ref[k], xw_ref[:, pl.ds(k, P)],
                       preferred_element_type=jnp.float32)
    y = jnp.maximum(acc + bias_ref[...], 0.0)               # (c_out, P), VPU ReLU

    # Classifier: per-column class scores (VPU multiply + cheap 8-deep sublane
    # reduce), then batch segmentation as ONE MXU contraction against the mask.
    s = jnp.sum(y[None, :, :] * planes_ref[...], axis=1)    # (n_cls, P)
    logits = jax.lax.dot_general(mask_ref[...], s,
                                 (((1,), (1,)), ((), ())),
                                 preferred_element_type=jnp.float32)  # (b, n_cls)
    o_ref[...] = (logits + fcb_ref[...]).astype(o_ref.dtype)


# ----------------------------- one-time weight prep ---------------------------

def prepare_params(conv_w, conv_b, fc_w, fc_b, *, b, t, L):
    """Weight-only preprocessing, hoisted out of the per-call path (run once)."""
    c_out, c_in, K = conv_w.shape
    l_out = L - K + 1
    N = b * t
    n_cls = fc_w.shape[1]
    P = ((N * L + _LANES - 1) // _LANES) * _LANES           # lane-dense col count

    # conv weight, tap-major: wk[k] = conv_w[:, :, k]  -> (K, c_out, c_in)
    wk = jnp.transpose(conv_w, (2, 0, 1)).astype(jnp.float32)
    bias = conv_b.reshape(c_out, 1).astype(jnp.float32)

    # classifier weight planes in column layout col = n*L + j (ZERO for j>=l_out
    # and for lane padding -- required so invalid conv columns cannot leak).
    w4 = fc_w.reshape(t, c_out, l_out, n_cls).astype(jnp.float32)
    pf = jnp.transpose(w4, (3, 1, 0, 2))                     # (n_cls, c_out, t, l_out)
    pf = jnp.pad(pf, ((0, 0), (0, 0), (0, 0), (0, L - l_out)))   # zero j >= l_out
    pf = jnp.tile(pf, (1, 1, b, 1))                          # (n_cls, c_out, N, L)
    planes = pf.reshape(n_cls, c_out, N * L)
    planes = jnp.pad(planes, ((0, 0), (0, 0), (0, P - N * L)))   # (n_cls, c_out, P)

    # 0/1 batch-membership mask (b, P); ZERO at invalid / padded columns.
    col = jnp.arange(P)
    n_idx = col // L
    j_idx = col % L
    valid = (j_idx < l_out) & (n_idx < N)
    mask = ((n_idx // t)[None, :] == jnp.arange(b)[:, None]) & valid[None, :]
    mask = mask.astype(jnp.float32)                          # (b, P)

    fcb = fc_b.reshape(1, n_cls).astype(jnp.float32)         # (1, n_cls)
    return wk, bias, planes, mask, fcb


# ----------------------------- per-call forward --------------------------------

@jax.jit
def encoder_classifier_forward(x, params):
    """Mirrors EncoderClassifier.forward for 4-D input x of shape (b, t, c, l)."""
    wk, bias, planes, mask, fcb = params
    b, t, c_in, L = x.shape
    N = b * t
    K = wk.shape[0]
    n_cls = fcb.shape[1]
    P = planes.shape[2]
    # x slab wide enough for the K shifted tap slices of width P.
    P2 = ((P + K - 1 + _LANES - 1) // _LANES) * _LANES

    # Only per-call activation prep: one tiny transpose/reshape/pad of ~2 KB.
    xw = jnp.transpose(x.reshape(N, c_in, L), (1, 0, 2)).reshape(c_in, N * L)
    xw = jnp.pad(xw.astype(jnp.float32), ((0, 0), (0, P2 - N * L)))   # (c_in, P2)

    return pl.pallas_call(
        _fused_kernel,
        out_shape=jax.ShapeDtypeStruct((b, n_cls), jnp.float32),
        # No grid: single invocation, every operand whole-array in VMEM
        # (no double-buffering / pipeline overhead for a ~20 KB problem).
        in_specs=[pl.BlockSpec(memory_space=pltpu.MemorySpace.VMEM)] * 6,
        out_specs=pl.BlockSpec(memory_space=pltpu.MemorySpace.VMEM),
    )(xw, wk, bias, planes, mask, fcb)


@jax.jit
def predict_proba(x, params):
    logits = encoder_classifier_forward(x, params)
    # softmax glue, matches nn.Softmax(dim=1) on forward(x).view(-1, 2)
    return jax.nn.softmax(logits.reshape(-1, 2), axis=1)


# ----------------------------- main --------------------------------------------

if __name__ == "__main__":
    # Small shapes consistent with the module's 4-D path: x is (b, t, c, l).
    b, t, c_in, L = 2, 4, 4, 16
    c_out, K = 8, 3
    l_out = L - K + 1                  # encoder.d_out = (c_out, l_out)
    n_classes = 2
    D = t * c_out * l_out

    key = jax.random.PRNGKey(0)
    kx, kw1, kb1, kw2, kb2 = jax.random.split(key, 5)

    x = jax.random.normal(kx, (b, t, c_in, L), dtype=jnp.float32)
    conv_w = 0.1 * jax.random.normal(kw1, (c_out, c_in, K), dtype=jnp.float32)
    conv_b = 0.1 * jax.random.normal(kb1, (c_out,), dtype=jnp.float32)
    fc_w = 0.05 * jax.random.normal(kw2, (D, n_classes), dtype=jnp.float32)
    fc_b = 0.05 * jax.random.normal(kb2, (n_classes,), dtype=jnp.float32)

    # One-time weight prep (hoisted out of the per-call path).
    params = jax.block_until_ready(
        prepare_params(conv_w, conv_b, fc_w, fc_b, b=b, t=t, L=L))

    logits = jax.block_until_ready(encoder_classifier_forward(x, params))
    probs = jax.block_until_ready(predict_proba(x, params))

    # Cross-check against a plain-JAX reference of the same forward pass.
    def ref_forward(x):
        xr = x.reshape(b * t, c_in, L)
        h = jax.lax.conv_general_dilated(
            xr, conv_w, window_strides=(1,), padding="VALID",
            dimension_numbers=("NCH", "OIH", "NCH"))
        h = jnp.maximum(h + conv_b[None, :, None], 0.0)
        return h.reshape(b, D) @ fc_w + fc_b[None, :]

    ref = ref_forward(x)
    assert logits.shape == (b, n_classes)
    assert probs.shape == (b, n_classes)
    assert jnp.allclose(logits, ref, atol=1e-4, rtol=1e-4)
    assert jnp.allclose(probs, jax.nn.softmax(ref, axis=1), atol=1e-4, rtol=1e-4)

    print("KERNEL_OK")
</pallas_src>

<mosaic_0001>
module attributes {stable_mosaic.version = 11 : i64} {
  func.func @_fused_kernel(%arg0: memref<4x256xf32, #tpu.memory_space<vmem>>, %arg1: memref<3x8x4xf32, #tpu.memory_space<vmem>>, %arg2: memref<8x1xf32, #tpu.memory_space<vmem>>, %arg3: memref<2x8x128xf32, #tpu.memory_space<vmem>>, %arg4: memref<2x128xf32, #tpu.memory_space<vmem>>, %arg5: memref<1x2xf32, #tpu.memory_space<vmem>>, %arg6: memref<2x2xf32, #tpu.memory_space<vmem>>) attributes {dimension_semantics = [], scalar_prefetch = 0 : i64, scratch_operands = 0 : i64, tpu.core_type = #tpu.core_type<tc>} {
    %c0 = arith.constant 0 : index
    %c0_0 = arith.constant 0 : index
    %c0_1 = arith.constant 0 : index
    %0 = vector.load %arg1[%c0, %c0_0, %c0_1] : memref<3x8x4xf32, #tpu.memory_space<vmem>>, vector<1x8x4xf32>
    %1 = vector.shape_cast %0 : vector<1x8x4xf32> to vector<8x4xf32>
    %c0_2 = arith.constant 0 : index
    %c0_3 = arith.constant 0 : index
    %2 = vector.load %arg0[%c0_2, %c0_3] : memref<4x256xf32, #tpu.memory_space<vmem>>, vector<4x128xf32>
    %cst = arith.constant dense<0.000000e+00> : vector<8x128xf32>
    %3 = tpu.matmul %1, %2, %cst {dimension_numbers = #tpu.dot_dimension_numbers<[1], [0], [0], [1], [0, 0, 1, 1], [], []>} : vector<8x4xf32>, vector<4x128xf32>, vector<8x128xf32> -> vector<8x128xf32>
    %c1 = arith.constant 1 : index
    %c0_4 = arith.constant 0 : index
    %c0_5 = arith.constant 0 : index
    %4 = vector.load %arg1[%c1, %c0_4, %c0_5] : memref<3x8x4xf32, #tpu.memory_space<vmem>>, vector<1x8x4xf32>
    %5 = vector.shape_cast %4 : vector<1x8x4xf32> to vector<8x4xf32>
    %c0_6 = arith.constant 0 : index
    %c1_7 = arith.constant 1 : index
    %6 = vector.load %arg0[%c0_6, %c1_7] : memref<4x256xf32, #tpu.memory_space<vmem>>, vector<4x128xf32>
    %cst_8 = arith.constant dense<0.000000e+00> : vector<8x128xf32>
    %7 = tpu.matmul %5, %6, %cst_8 {dimension_numbers = #tpu.dot_dimension_numbers<[1], [0], [0], [1], [0, 0, 1, 1], [], []>} : vector<8x4xf32>, vector<4x128xf32>, vector<8x128xf32> -> vector<8x128xf32>
    %8 = arith.addf %3, %7 : vector<8x128xf32>
    %c2 = arith.constant 2 : index
    %c0_9 = arith.constant 0 : index
    %c0_10 = arith.constant 0 : index
    %9 = vector.load %arg1[%c2, %c0_9, %c0_10] : memref<3x8x4xf32, #tpu.memory_space<vmem>>, vector<1x8x4xf32>
    %10 = vector.shape_cast %9 : vector<1x8x4xf32> to vector<8x4xf32>
    %c0_11 = arith.constant 0 : index
    %c2_12 = arith.constant 2 : index
    %11 = vector.load %arg0[%c0_11, %c2_12] : memref<4x256xf32, #tpu.memory_space<vmem>>, vector<4x128xf32>
    %cst_13 = arith.constant dense<0.000000e+00> : vector<8x128xf32>
    %12 = tpu.matmul %10, %11, %cst_13 {dimension_numbers = #tpu.dot_dimension_numbers<[1], [0], [0], [1], [0, 0, 1, 1], [], []>} : vector<8x4xf32>, vector<4x128xf32>, vector<8x128xf32> -> vector<8x128xf32>
    %13 = arith.addf %8, %12 : vector<8x128xf32>
    %c0_14 = arith.constant 0 : index
    %c0_15 = arith.constant 0 : index
    %14 = vector.load %arg2[%c0_14, %c0_15] : memref<8x1xf32, #tpu.memory_space<vmem>>, vector<8x1xf32>
    %15 = vector.broadcast %14 : vector<8x1xf32> to vector<8x128xf32>
    %16 = arith.addf %13, %15 : vector<8x128xf32>
    %cst_16 = arith.constant 0.000000e+00 : f32
    %17 = vector.broadcast %cst_16 : f32 to vector<8x128xf32>
    %18 = arith.maximumf %16, %17 : vector<8x128xf32>
    %19 = vector.shape_cast %18 : vector<8x128xf32> to vector<1x8x128xf32>
    %c0_17 = arith.constant 0 : index
    %c0_18 = arith.constant 0 : index
    %c0_19 = arith.constant 0 : index
    %20 = vector.load %arg3[%c0_17, %c0_18, %c0_19] : memref<2x8x128xf32, #tpu.memory_space<vmem>>, vector<2x8x128xf32>
    %21 = vector.broadcast %19 : vector<1x8x128xf32> to vector<2x8x128xf32>
    %22 = arith.mulf %21, %20 : vector<2x8x128xf32>
    %cst_20 = arith.constant dense<0.000000e+00> : vector<2x128xf32>
    %23 = vector.multi_reduction <add>, %22, %cst_20 [1] : vector<2x8x128xf32> to vector<2x128xf32>
    %c0_21 = arith.constant 0 : index
    %c0_22 = arith.constant 0 : index
    %24 = vector.load %arg4[%c0_21, %c0_22] : memref<2x128xf32, #tpu.memory_space<vmem>>, vector<2x128xf32>
    %cst_23 = arith.constant dense<0.000000e+00> : vector<2x2xf32>
    %25 = tpu.matmul %24, %23, %cst_23 {dimension_numbers = #tpu.dot_dimension_numbers<[1], [1], [0], [0], [0, 0, 1, 0], [], []>} : vector<2x128xf32>, vector<2x128xf32>, vector<2x2xf32> -> vector<2x2xf32>
    %c0_24 = arith.constant 0 : index
    %c0_25 = arith.constant 0 : index
    %26 = vector.load %arg5[%c0_24, %c0_25] : memref<1x2xf32, #tpu.memory_space<vmem>>, vector<1x2xf32>
    %27 = vector.broadcast %26 : vector<1x2xf32> to vector<2x2xf32>
    %28 = arith.addf %25, %27 : vector<2x2xf32>
    %c0_26 = arith.constant 0 : index
    %c0_27 = arith.constant 0 : index
    %29 = vector.load %arg6[%c0_26, %c0_27] : memref<2x2xf32, #tpu.memory_space<vmem>>, vector<2x2xf32>
    tpu.vector_store %arg6[%c0_26, %c0_27], %28 {strides = array<i32>} : memref<2x2xf32, #tpu.memory_space<vmem>>, vector<2x2xf32>,
    return
  }
}

</mosaic_0001>

<llo_original>
// kernel: encoder_classifier_forward.1
$region0: #{encoder_classifier_forward.1}
  #allocation0 [shape = 'u32[]', space=smem, size = 0x4, offset = 0x4, fixed_abs, tag = 'smem constant byte address 0x4 - core index']
  #allocation1 [shape = 'u32[72,128]{1,0:T(1,128)}', space=vmem, size = 0x9000, scoped, tag = 'internal scratch']
  %s0 = inlined_call_operand.vmem [shape: f32[4,256], index: 0, kind: input, shape index: {}]
  %s1 = inlined_call_operand.vmem [shape: f32[3,8,4], index: 1, kind: input, shape index: {}]
  %s2 = inlined_call_operand.vmem [shape: f32[8,1], index: 2, kind: input, shape index: {}]
  %s3 = inlined_call_operand.vmem [shape: f32[2,8,128], index: 3, kind: input, shape index: {}]
  %s4 = inlined_call_operand.vmem [shape: f32[2,128], index: 4, kind: input, shape index: {}]
  %s5 = inlined_call_operand.vmem [shape: f32[1,2], index: 5, kind: input, shape index: {}]
  %s6 = inlined_call_operand.hbm [shape: f32[2,2], index: 6, kind: output, shape index: {}]
  %s7 = sld [smem:[#allocation0]]
  $region34: #{encoder_classifier_forward.1} parent=0
    _
  %s9 = ssub.s32 1, %s7
  %s10 = scalar_select 0, %s9, %s7
  $region1: #{encoder_classifier_forward.1} parent=0
    #allocation2 [shape = 'u8[1024]{0}', space=vmem, size = 0x400, scoped, tag = 'output window, operand 0, single buffered']
    #allocation3 [shape = 's32[1]{0}', space=sflag, size = 0x4, scoped, tag = 'scoped memory for encoder_classifier_forward.1']
    %11 = vsyncpa [#allocation3], 0
    // Predicated region
    $region2: #{encoder_classifier_forward.1} parent=1 // pred_check
      _
    $region3: #{encoder_classifier_forward.1} parent=1 // pred_check_branch
      %13 = sbr.rel (0) target = $region5
    $region4: #{encoder_classifier_forward.1} parent=1 // pred_region
      _
    $region5: #{encoder_classifier_forward.1} parent=1 // pred_fallthru
      _
    // Predicated region
    $region6: #{encoder_classifier_forward.1} parent=1 // pred_check
      _
    $region7: #{encoder_classifier_forward.1} parent=1 // pred_check_branch
      %15 = sbr.rel (0) target = $region9
    $region8: #{encoder_classifier_forward.1} parent=1 // pred_region
      _
    $region9: #{encoder_classifier_forward.1} parent=1 // pred_fallthru
      _
    // Predicated region
    $region10: #{encoder_classifier_forward.1} parent=1 // pred_check
      _
    $region11: #{encoder_classifier_forward.1} parent=1 // pred_check_branch
      %17 = sbr.rel (0) target = $region13
    $region12: #{encoder_classifier_forward.1} parent=1 // pred_region
      _
    $region13: #{encoder_classifier_forward.1} parent=1 // pred_fallthru
      _
    // Predicated region
    $region14: #{encoder_classifier_forward.1} parent=1 // pred_check
      _
    $region15: #{encoder_classifier_forward.1} parent=1 // pred_check_branch
      %19 = sbr.rel (0) target = $region17
    $region16: #{encoder_classifier_forward.1} parent=1 // pred_region
      _
    $region17: #{encoder_classifier_forward.1} parent=1 // pred_fallthru
      _
    // Predicated region
    $region18: #{encoder_classifier_forward.1} parent=1 // pred_check
      _
    $region19: #{encoder_classifier_forward.1} parent=1 // pred_check_branch
      %21 = sbr.rel (0) target = $region21
    $region20: #{encoder_classifier_forward.1} parent=1 // pred_region
      _
    $region21: #{encoder_classifier_forward.1} parent=1 // pred_fallthru
      _
    // Predicated region
    $region22: #{encoder_classifier_forward.1} parent=1 // pred_check
      _
    $region23: #{encoder_classifier_forward.1} parent=1 // pred_check_branch
      %23 = sbr.rel (0) target = $region25
    $region24: #{encoder_classifier_forward.1} parent=1 // pred_region
      _
    $region25: #{encoder_classifier_forward.1} parent=1 // pred_fallthru
      _
    %v24 = vld [vmem:[%s1] sm:$0xff]
    %v25 = vld [vmem:[%s0] sm:$0xf]
    %s26 = scalar_lea.vmem %s1, 8
    %v27 = vld [vmem:[%s26] sm:$0xff]
    %v28 = vld [vmem:[%s0] sm:$0xff]
    %30 = vst [vmem:[#allocation1] ss:$2 sm:$0xff] %v28
    %v31 = vld.sshfl [vmem:[#allocation1] sm:$0xff pattern:$0x75316420]
    %v32 = vld.sshfl [vmem:[#allocation1 + $0x8] sm:$0xff pattern:$0x75316420]
    %33 = vrot.lane.b32.xlu0 %v31, 127
    %v34 = vpop.permute.xlu0 %33
    %35 = vrot.lane.b32.xlu0 %v32, 127
    %v36 = vpop.permute.xlu0 %35
    %vm37 = vcmask 1039360
    %v38 = vsel %vm37, %v34, %v36
    %vm39 = vcmask 31744
    %v41 = vsel %vm39, %v27, 0
    %vm43 = vcmask 1043456
    %v44 = vsel %vm43, %v38, 0
    %46 = vmatpush.msra.mxu0 0.0
    %47 = vmatpush.msra.mxu0 0.0
    %48 = vmatpush.msra.mxu0 0.0
    %49 = vmatpush.msra.mxu0 0.0
    %50 = vmatpush.msra.mxu0 0.0
    %51 = vmatpush.msra.mxu0 0.0
    %52 = vmatpush.msra.mxu0 0.0
    %53 = vmatpush.msra.mxu0 0.0
    %54 = vmatpush.msra.mxu0 0.0
    %55 = vmatpush.msra.mxu0 0.0
    %56 = vmatpush.msra.mxu0 0.0
    %57 = vmatpush.msra.mxu0 0.0
    %58 = vmatpush.msra.mxu0 0.0
    %59 = vmatpush.msra.mxu0 0.0
    %60 = vmatpush.msra.mxu0 0.0
    %61 = vmatpush.msra.mxu0 %v44
    %62 = vmatmul.f32.gmra.mxu0 %v41
    %v63 = vpop.f32.mrf.mxu0
    %v64 = vadd.f32 0.0, %v63
    %65 = vdwg.mxu0
    %v67 = vsel %vm39, %v24, 0
    %v70 = vsel %vm43, %v25, 0
    %72 = vmatpush.msra.mxu0 0.0
    %73 = vmatpush.msra.mxu0 0.0
    %74 = vmatpush.msra.mxu0 0.0
    %75 = vmatpush.msra.mxu0 0.0
    %76 = vmatpush.msra.mxu0 0.0
    %77 = vmatpush.msra.mxu0 0.0
    %78 = vmatpush.msra.mxu0 0.0
    %79 = vmatpush.msra.mxu0 0.0
    %80 = vmatpush.msra.mxu0 0.0
    %81 = vmatpush.msra.mxu0 0.0
    %82 = vmatpush.msra.mxu0 0.0
    %83 = vmatpush.msra.mxu0 0.0
    %84 = vmatpush.msra.mxu0 0.0
    %85 = vmatpush.msra.mxu0 0.0
    %86 = vmatpush.msra.mxu0 0.0
    %87 = vmatpush.msra.mxu0 %v70
    %88 = vmatmul.f32.gmra.mxu0 %v67
    %v89 = vpop.f32.mrf.mxu0
    %v90 = vadd.f32 %v64, %v89
    %91 = vdwg.mxu0
    %s92 = scalar_lea.vmem %s1, 16
    %v93 = vld [vmem:[%s92] sm:$0xff]
    %v94 = vld [vmem:[%s0] sm:$0xff]
    %96 = vst [vmem:[#allocation1] ss:$2 sm:$0xff] %v94
    %v97 = vld.sshfl [vmem:[#allocation1] sm:$0xff pattern:$0x75316420]
    %v98 = vld.sshfl [vmem:[#allocation1 + $0x8] sm:$0xff pattern:$0x75316420]
    %99 = vrot.lane.b32.xlu0 %v97, 126
    %v100 = vpop.permute.xlu0 %99
    %101 = vrot.lane.b32.xlu0 %v98, 126
    %v102 = vpop.permute.xlu0 %101
    %vm103 = vcmask 1031168
    %v104 = vsel %vm103, %v100, %v102
    %v106 = vsel %vm39, %v93, 0
    %v108 = vsel %vm43, %v104, 0
    %110 = vmatpush.msra.mxu0 0.0
    %111 = vmatpush.msra.mxu0 0.0
    %112 = vmatpush.msra.mxu0 0.0
    %113 = vmatpush.msra.mxu0 0.0
    %114 = vmatpush.msra.mxu0 0.0
    %115 = vmatpush.msra.mxu0 0.0
    %116 = vmatpush.msra.mxu0 0.0
    %117 = vmatpush.msra.mxu0 0.0
    %118 = vmatpush.msra.mxu0 0.0
    %119 = vmatpush.msra.mxu0 0.0
    %120 = vmatpush.msra.mxu0 0.0
    %121 = vmatpush.msra.mxu0 0.0
    %122 = vmatpush.msra.mxu0 0.0
    %123 = vmatpush.msra.mxu0 0.0
    %124 = vmatpush.msra.mxu0 0.0
    %125 = vmatpush.msra.mxu0 %v108
    %126 = vmatmul.f32.gmra.mxu0 %v106
    %v127 = vpop.f32.mrf.mxu0
    %v128 = vadd.f32 0.0, %v127
    %129 = vdwg.mxu0
    %v130 = vadd.f32 %v90, %v128
    %v131 = vld [vmem:[%s2] sm:$0xff]
    %133 = vset.pattern.permute.xlu0 0
    %134 = vperm.xlu0 %133, %v131
    %v135 = vpop.permute.xlu0 %134
    %v137 = vadd.f32 %v130, %v135
    %v138 = vmax.f32 %v137, 0.0
    %v139 = vld [vmem:[%s3] sm:$0xff]
    %v140 = vld [vmem:[%s3 + $0x8] sm:$0xff]
    %v141 = vmul.f32 %v138, %v139
    %v142 = vmul.f32 %v138, %v140
    %v143 = vrot.slane %v141, 4
    %v144 = vadd.f32 %v141, %v143
    %v145 = vrot.slane %v144, 2
    %v146 = vadd.f32 %v144, %v145
    %v147 = vrot.slane %v146, 1
    %v148 = vadd.f32 %v146, %v147
    %v149 = vrot.slane %v142, 4
    %v150 = vadd.f32 %v142, %v149
    %v151 = vrot.slane %v150, 2
    %v152 = vadd.f32 %v150, %v151
    %v153 = vrot.slane %v152, 1
    %v154 = vadd.f32 %v152, %v153
    %v155 = vld [vmem:[%s4] sm:$0x3]
    %v156 = vld [vmem:[%s5] sm:$0x1]
    %v158 = vperm.slane %v156, 0
    %vm162 = vcmask 1041409
    %v163 = vsel %vm162, %v154, %v148
    %165 = vmatpush.xpose.msra.mxu0 0.0
    %166 = vmatpush.xpose.msra.mxu0 0.0
    %167 = vmatpush.xpose.msra.mxu0 0.0
    %168 = vmatpush.xpose.msra.mxu0 0.0
    %169 = vmatpush.xpose.msra.mxu0 0.0
    %170 = vmatpush.xpose.msra.mxu0 0.0
    %171 = vmatpush.xpose.msra.mxu0 0.0
    %172 = vmatpush.xpose.msra.mxu0 0.0
    %173 = vmatpush.xpose.msra.mxu0 0.0
    %174 = vmatpush.xpose.msra.mxu0 0.0
    %175 = vmatpush.xpose.msra.mxu0 0.0
    %176 = vmatpush.xpose.msra.mxu0 0.0
    %177 = vmatpush.xpose.msra.mxu0 0.0
    %178 = vmatpush.xpose.msra.mxu0 0.0
    %179 = vmatpush.xpose.msra.mxu0 0.0
    %180 = vmatpush.xpose.msra.mxu0 %v163
    %181 = vmatmul.f32.gmra.mxu0 %v155
    %v182 = vpop.f32.mrf.mxu0
    %v183 = vadd.f32 %v158, %v182
    %184 = vdwg.mxu0
    %vm185 = vcmask 9216
    %186 = vst.msk [vmem:[#allocation2] sm:$0x3] %vm185, %v183
    // Predicated region
    $region26: #{encoder_classifier_forward.1} parent=1 // pred_check
      _
    $region27: #{encoder_classifier_forward.1} parent=1 // pred_check_branch
      %188 = sbr.rel (0) target = $region29
    $region28: #{encoder_classifier_forward.1} parent=1 // pred_region
      %190 = vsyncadd [#allocation3], 0
      %s192 = sshll.u32 [#allocation2], 4
      %s193 = int_to_ptr.vmem [resolvable:$true] %s192
      %s194 = sshll.u32 %s6, 4
      %s195 = int_to_ptr.hbm [resolvable:$true] %s194
      %197 = dma.vmem_to_hbm [thread:$0]  %s193, 32, %s195, [#allocation3]
    $region29: #{encoder_classifier_forward.1} parent=1 // pred_fallthru
      _
    // Predicated region
    $region30: #{encoder_classifier_forward.1} parent=1 // pred_check
      _
    $region31: #{encoder_classifier_forward.1} parent=1 // pred_check_branch
      %199 = sbr.rel (0) target = $region33
    $region32: #{encoder_classifier_forward.1} parent=1 // pred_region
      %201 = dma.done [#allocation3], 32
    $region33: #{encoder_classifier_forward.1} parent=1 // pred_fallthru
      _
    %202 = vsyncpa [#allocation3], 1

</llo_original>
